<compile_context>
chip_gen: v7x
topology: tpu7x:2x2x1
jax: 0.10.0
libtpu: 0.0.40
codegen_flags: <defaults>
</compile_context>

<pallas_src>
import jax
import jax.numpy as jnp
from jax.experimental import pallas as pl
from jax.experimental.pallas import tpu as pltpu

B = 8           # batched RHS evaluations (independent forward calls)
N = 64          # number of graph nodes
H = 32          # hidden / feature dim of x and h0
LANE = 128      # TPU lane width: pad feature dim to this for dense stores


def _gde_kernel(x_ref, h0_ref, a_ref, w1a_ref, w1b_ref, w2_ref,
                b1_ref, b2_ref, o_ref):
    # One grid step == one ControlledGDEFunc.forward(t, x_b) evaluation.
    x = x_ref[...]          # [N, H]   bf16
    h0 = h0_ref[...]        # [N, H]   bf16
    a = a_ref[...]          # [N, N]   bf16 (resident across the grid)
    b1 = b1_ref[...]        # [1, Hp]  f32  (resident)
    b2 = b2_ref[...]        # [1, Hp]  f32  (resident)

    # Layer 1 feature transform: [x || h0] @ W1  ==  x @ W1a + h0 @ W1b
    xw1 = (jnp.dot(x, w1a_ref[...], preferred_element_type=jnp.float32)
           + jnp.dot(h0, w1b_ref[...], preferred_element_type=jnp.float32))  # [N, Hp] f32

    # Layer 1 aggregation + bias + softplus (stable via logaddexp, runs on EUP)
    z1 = jnp.dot(a, xw1.astype(a.dtype), preferred_element_type=jnp.float32) + b1
    h1 = jnp.logaddexp(z1, 0.0)                                               # [N, Hp] f32

    # Layer 2 (no activation)
    hw2 = jnp.dot(h1.astype(w2_ref.dtype), w2_ref[...],
                  preferred_element_type=jnp.float32)                          # [N, Hp] f32
    z2 = jnp.dot(a, hw2.astype(a.dtype), preferred_element_type=jnp.float32) + b2

    o_ref[...] = z2.astype(o_ref.dtype)                                       # [N, Hp]


def _pad_last(v, target):
    pad = target - v.shape[-1]
    if pad == 0:
        return v
    return jnp.pad(v, [(0, 0)] * (v.ndim - 1) + [(0, pad)])


def controlled_gde_forward(x, h0, a_hat, w1, b1, w2, b2,
                           *, compute_dtype=jnp.bfloat16):
    """Batched ControlledGDEFunc forward.

    x, h0: [B, N, H]   per-evaluation node features / hooked initial features
    a_hat: [N, N]      dense normalized adjacency (shared)
    w1:    [2H, H], b1: [H], w2: [H, H], b2: [H]
    Returns [B, N, H] float32.
    """
    b_sz, n, h = x.shape
    hp = pl.cdiv(h, LANE) * LANE   # lane-dense hidden/output width (>= 128)

    cd = compute_dtype
    x_c = x.astype(cd)
    h0_c = h0.astype(cd)
    a_c = a_hat.astype(cd)

    # Split W1 (kills the in-kernel concat) and zero-pad feature dim to hp.
    w1a = _pad_last(w1[:h], hp).astype(cd)                       # [H, Hp]
    w1b = _pad_last(w1[h:], hp).astype(cd)                       # [H, Hp]
    w2p = jnp.pad(w2, ((0, hp - h), (0, hp - h))).astype(cd)     # [Hp, Hp] (zero rows kill pad cols of h1)
    b1p = _pad_last(b1.reshape(1, h), hp).astype(jnp.float32)    # [1, Hp]
    b2p = _pad_last(b2.reshape(1, h), hp).astype(jnp.float32)    # [1, Hp]

    # Resident operands: same block for every grid step -> fetched once.
    resident = lambda shape: pl.BlockSpec(shape, lambda b, s=shape: tuple(0 for _ in s))

    out_padded = pl.pallas_call(
        _gde_kernel,
        out_shape=jax.ShapeDtypeStruct((b_sz, n, hp), jnp.float32),
        grid=(b_sz,),
        in_specs=[
            pl.BlockSpec((None, n, h), lambda b: (b, 0, 0)),     # x  (pipelined over B)
            pl.BlockSpec((None, n, h), lambda b: (b, 0, 0)),     # h0 (pipelined over B)
            resident((n, n)),                                    # A_hat
            resident((h, hp)),                                   # W1a
            resident((h, hp)),                                   # W1b
            resident((hp, hp)),                                  # W2
            resident((1, hp)),                                   # b1
            resident((1, hp)),                                   # b2
        ],
        out_specs=pl.BlockSpec((None, n, hp), lambda b: (b, 0, 0)),
        compiler_params=pltpu.CompilerParams(
            dimension_semantics=("parallel",)),                  # shard B across TCs (v7x)
    )(x_c, h0_c, a_c, w1a, w1b, w2p, b1p, b2p)

    return out_padded[..., :h]


def make_normalized_adjacency(n):
    # Deterministic ring graph + self loops, symmetric normalization
    # A_hat = D^{-1/2} (A + I) D^{-1/2}
    idx = jnp.arange(n)
    a = jnp.zeros((n, n), jnp.float32)
    a = a.at[idx, (idx + 1) % n].set(1.0)
    a = a.at[idx, (idx - 1) % n].set(1.0)
    a = a + jnp.eye(n, dtype=jnp.float32)
    d = jnp.sum(a, axis=1)
    d_inv_sqrt = 1.0 / jnp.sqrt(d)
    return a * d_inv_sqrt[:, None] * d_inv_sqrt[None, :]


def _reference(x, h0, a_hat, w1, b1, w2, b2):
    # Pure-JAX reference mirroring the kernel's bf16-feed / f32-accumulate math.
    bf = lambda v: v.astype(jnp.bfloat16).astype(jnp.float32)
    hi = jax.lax.Precision.HIGHEST
    xcat = jnp.concatenate([bf(x), bf(h0)], axis=-1)                      # [B,N,2H]
    xw1 = jnp.einsum('bnk,kh->bnh', xcat, bf(w1), precision=hi)
    z1 = jnp.einsum('ij,bjh->bih', bf(a_hat), bf(xw1), precision=hi) + b1
    h1 = jax.nn.softplus(z1)
    hw2 = jnp.einsum('bnh,hk->bnk', bf(h1), bf(w2), precision=hi)
    z2 = jnp.einsum('ij,bjh->bih', bf(a_hat), bf(hw2), precision=hi) + b2
    return z2


if __name__ == "__main__":
    key = jax.random.PRNGKey(0)
    kx, kh0, kw1, kw2 = jax.random.split(key, 4)

    # Batched node features x and hooked initial features h0.
    x = jax.random.normal(kx, (B, N, H), jnp.float32)
    h0 = jax.random.normal(kh0, (B, N, H), jnp.float32)

    # Deterministic GCN parameters (Glorot-like scaling).
    w1 = jax.random.normal(kw1, (2 * H, H), jnp.float32) * (1.0 / jnp.sqrt(2.0 * H))
    b1 = jnp.zeros((H,), jnp.float32)
    w2 = jax.random.normal(kw2, (H, H), jnp.float32) * (1.0 / jnp.sqrt(1.0 * H))
    b2 = jnp.zeros((H,), jnp.float32)

    a_hat = make_normalized_adjacency(N)

    out = controlled_gde_forward(x, h0, a_hat, w1, b1, w2, b2)
    out = jax.block_until_ready(out)

    ref = _reference(x, h0, a_hat, w1, b1, w2, b2)
    assert out.shape == (B, N, H)
    assert jnp.allclose(out, ref, atol=3e-2, rtol=3e-2), (
        float(jnp.max(jnp.abs(out - ref))))

    print("KERNEL_OK")
</pallas_src>

<mosaic_0001>
module attributes {stable_mosaic.version = 11 : i64} {
  func.func @_gde_kernel(%arg0: i32, %arg1: memref<1x64x32xbf16, #tpu.memory_space<vmem>>, %arg2: memref<1x64x32xbf16, #tpu.memory_space<vmem>>, %arg3: memref<64x64xbf16, #tpu.memory_space<vmem>>, %arg4: memref<32x128xbf16, #tpu.memory_space<vmem>>, %arg5: memref<32x128xbf16, #tpu.memory_space<vmem>>, %arg6: memref<128x128xbf16, #tpu.memory_space<vmem>>, %arg7: memref<1x128xf32, #tpu.memory_space<vmem>>, %arg8: memref<1x128xf32, #tpu.memory_space<vmem>>, %arg9: memref<1x64x128xf32, #tpu.memory_space<vmem>>) attributes {dimension_semantics = [#tpu.dimension_semantics<parallel>], iteration_bounds = array<i64: 8>, scalar_prefetch = 0 : i64, scratch_operands = 0 : i64, tpu.core_type = #tpu.core_type<tc>, window_params = [{transform_indices = @transform_0, window_bounds = array<i64: 1, 64, 32>}, {transform_indices = @transform_1, window_bounds = array<i64: 1, 64, 32>}, {pipeline_mode = #tpu.pipeline_mode<synchronous>, transform_indices = @transform_2, window_bounds = array<i64: 64, 64>}, {pipeline_mode = #tpu.pipeline_mode<synchronous>, transform_indices = @transform_3, window_bounds = array<i64: 32, 128>}, {pipeline_mode = #tpu.pipeline_mode<synchronous>, transform_indices = @transform_4, window_bounds = array<i64: 32, 128>}, {pipeline_mode = #tpu.pipeline_mode<synchronous>, transform_indices = @transform_5, window_bounds = array<i64: 128, 128>}, {pipeline_mode = #tpu.pipeline_mode<synchronous>, transform_indices = @transform_6, window_bounds = array<i64: 1, 128>}, {pipeline_mode = #tpu.pipeline_mode<synchronous>, transform_indices = @transform_7, window_bounds = array<i64: 1, 128>}, {transform_indices = @transform_8, window_bounds = array<i64: 1, 64, 128>}]} {
    %c0 = arith.constant 0 : index
    %c0_0 = arith.constant 0 : index
    %c0_1 = arith.constant 0 : index
    %0 = vector.load %arg1[%c0, %c0_0, %c0_1] : memref<1x64x32xbf16, #tpu.memory_space<vmem>>, vector<1x64x32xbf16>
    %1 = vector.shape_cast %0 : vector<1x64x32xbf16> to vector<64x32xbf16>
    %c0_2 = arith.constant 0 : index
    %c0_3 = arith.constant 0 : index
    %c0_4 = arith.constant 0 : index
    %2 = vector.load %arg2[%c0_2, %c0_3, %c0_4] : memref<1x64x32xbf16, #tpu.memory_space<vmem>>, vector<1x64x32xbf16>
    %3 = vector.shape_cast %2 : vector<1x64x32xbf16> to vector<64x32xbf16>
    %c0_5 = arith.constant 0 : index
    %c0_6 = arith.constant 0 : index
    %4 = vector.load %arg3[%c0_5, %c0_6] : memref<64x64xbf16, #tpu.memory_space<vmem>>, vector<64x64xbf16>
    %c0_7 = arith.constant 0 : index
    %c0_8 = arith.constant 0 : index
    %5 = vector.load %arg7[%c0_7, %c0_8] : memref<1x128xf32, #tpu.memory_space<vmem>>, vector<1x128xf32>
    %c0_9 = arith.constant 0 : index
    %c0_10 = arith.constant 0 : index
    %6 = vector.load %arg8[%c0_9, %c0_10] : memref<1x128xf32, #tpu.memory_space<vmem>>, vector<1x128xf32>
    %c0_11 = arith.constant 0 : index
    %c0_12 = arith.constant 0 : index
    %7 = vector.load %arg4[%c0_11, %c0_12] : memref<32x128xbf16, #tpu.memory_space<vmem>>, vector<32x128xbf16>
    %cst = arith.constant dense<0.000000e+00> : vector<64x128xf32>
    %8 = tpu.matmul %1, %7, %cst {dimension_numbers = #tpu.dot_dimension_numbers<[1], [0], [0], [1], [0, 0, 1, 1], [], []>} : vector<64x32xbf16>, vector<32x128xbf16>, vector<64x128xf32> -> vector<64x128xf32>
    %c0_13 = arith.constant 0 : index
    %c0_14 = arith.constant 0 : index
    %9 = vector.load %arg5[%c0_13, %c0_14] : memref<32x128xbf16, #tpu.memory_space<vmem>>, vector<32x128xbf16>
    %cst_15 = arith.constant dense<0.000000e+00> : vector<64x128xf32>
    %10 = tpu.matmul %3, %9, %cst_15 {dimension_numbers = #tpu.dot_dimension_numbers<[1], [0], [0], [1], [0, 0, 1, 1], [], []>} : vector<64x32xbf16>, vector<32x128xbf16>, vector<64x128xf32> -> vector<64x128xf32>
    %11 = arith.addf %8, %10 : vector<64x128xf32>
    %12 = arith.truncf %11 : vector<64x128xf32> to vector<64x128xbf16>
    %cst_16 = arith.constant dense<0.000000e+00> : vector<64x128xf32>
    %13 = tpu.matmul %4, %12, %cst_16 {dimension_numbers = #tpu.dot_dimension_numbers<[1], [0], [0], [1], [0, 0, 1, 1], [], []>} : vector<64x64xbf16>, vector<64x128xbf16>, vector<64x128xf32> -> vector<64x128xf32>
    %14 = vector.broadcast %5 : vector<1x128xf32> to vector<64x128xf32>
    %15 = arith.addf %13, %14 : vector<64x128xf32>
    %cst_17 = arith.constant 0.000000e+00 : f32
    %16 = vector.broadcast %cst_17 : f32 to vector<64x128xf32>
    %17 = arith.maximumf %15, %16 : vector<64x128xf32>
    %18 = vector.broadcast %cst_17 : f32 to vector<64x128xf32>
    %19 = arith.subf %15, %18 : vector<64x128xf32>
    %20 = arith.cmpf one, %19, %19 : vector<64x128xf32>
    %21 = vector.broadcast %cst_17 : f32 to vector<64x128xf32>
    %22 = arith.addf %15, %21 : vector<64x128xf32>
    %23 = math.absf %19 : vector<64x128xf32>
    %cst_18 = arith.constant 0.000000e+00 : f32
    %24 = vector.broadcast %cst_18 : f32 to vector<64x128xf32>
    %25 = arith.subf %24, %23 : vector<64x128xf32>
    %26 = math.exp %25 : vector<64x128xf32>
    %27 = math.log1p %26 : vector<64x128xf32>
    %28 = arith.addf %17, %27 : vector<64x128xf32>
    %29 = arith.select %20, %22, %28 : vector<64x128xi1>, vector<64x128xf32>
    %30 = arith.truncf %29 : vector<64x128xf32> to vector<64x128xbf16>
    %c0_19 = arith.constant 0 : index
    %c0_20 = arith.constant 0 : index
    %31 = vector.load %arg6[%c0_19, %c0_20] : memref<128x128xbf16, #tpu.memory_space<vmem>>, vector<128x128xbf16>
    %cst_21 = arith.constant dense<0.000000e+00> : vector<64x128xf32>
    %32 = tpu.matmul %30, %31, %cst_21 {dimension_numbers = #tpu.dot_dimension_numbers<[1], [0], [0], [1], [0, 0, 1, 1], [], []>} : vector<64x128xbf16>, vector<128x128xbf16>, vector<64x128xf32> -> vector<64x128xf32>
    %33 = arith.truncf %32 : vector<64x128xf32> to vector<64x128xbf16>
    %cst_22 = arith.constant dense<0.000000e+00> : vector<64x128xf32>
    %34 = tpu.matmul %4, %33, %cst_22 {dimension_numbers = #tpu.dot_dimension_numbers<[1], [0], [0], [1], [0, 0, 1, 1], [], []>} : vector<64x64xbf16>, vector<64x128xbf16>, vector<64x128xf32> -> vector<64x128xf32>
    %35 = vector.broadcast %6 : vector<1x128xf32> to vector<64x128xf32>
    %36 = arith.addf %34, %35 : vector<64x128xf32>
    %c0_23 = arith.constant 0 : index
    %c0_24 = arith.constant 0 : index
    %c0_25 = arith.constant 0 : index
    %37 = vector.load %arg9[%c0_23, %c0_24, %c0_25] : memref<1x64x128xf32, #tpu.memory_space<vmem>>, vector<1x64x128xf32>
    %38 = vector.shape_cast %37 : vector<1x64x128xf32> to vector<64x128xf32>
    %39 = vector.shape_cast %36 : vector<64x128xf32> to vector<1x64x128xf32>
    tpu.vector_store %arg9[%c0_23, %c0_24, %c0_25], %39 {strides = array<i32>} : memref<1x64x128xf32, #tpu.memory_space<vmem>>, vector<1x64x128xf32>,
    return
  }
  func.func @transform_0(%arg0: i32) -> (i32, i32, i32) {
    %c0_i32 = arith.constant 0 : i32
    %c0_i32_0 = arith.constant 0 : i32
    %c0_i32_1 = arith.constant 0 : i32
    return %arg0, %c0_i32, %c0_i32_0 : i32, i32, i32
  }
  func.func @transform_1(%arg0: i32) -> (i32, i32, i32) {
    %c0_i32 = arith.constant 0 : i32
    %c0_i32_0 = arith.constant 0 : i32
    %c0_i32_1 = arith.constant 0 : i32
    return %arg0, %c0_i32, %c0_i32_0 : i32, i32, i32
  }
  func.func @transform_2(%arg0: i32) -> (i32, i32) {
    %c0_i32 = arith.constant 0 : i32
    %c0_i32_0 = arith.constant 0 : i32
    %c0_i32_1 = arith.constant 0 : i32
    return %c0_i32, %c0_i32_0 : i32, i32
  }
  func.func @transform_3(%arg0: i32) -> (i32, i32) {
    %c0_i32 = arith.constant 0 : i32
    %c0_i32_0 = arith.constant 0 : i32
    %c0_i32_1 = arith.constant 0 : i32
    return %c0_i32, %c0_i32_0 : i32, i32
  }
  func.func @transform_4(%arg0: i32) -> (i32, i32) {
    %c0_i32 = arith.constant 0 : i32
    %c0_i32_0 = arith.constant 0 : i32
    %c0_i32_1 = arith.constant 0 : i32
    return %c0_i32, %c0_i32_0 : i32, i32
  }
  func.func @transform_5(%arg0: i32) -> (i32, i32) {
    %c0_i32 = arith.constant 0 : i32
    %c0_i32_0 = arith.constant 0 : i32
    %c0_i32_1 = arith.constant 0 : i32
    return %c0_i32, %c0_i32_0 : i32, i32
  }
  func.func @transform_6(%arg0: i32) -> (i32, i32) {
    %c0_i32 = arith.constant 0 : i32
    %c0_i32_0 = arith.constant 0 : i32
    %c0_i32_1 = arith.constant 0 : i32
    return %c0_i32, %c0_i32_0 : i32, i32
  }
  func.func @transform_7(%arg0: i32) -> (i32, i32) {
    %c0_i32 = arith.constant 0 : i32
    %c0_i32_0 = arith.constant 0 : i32
    %c0_i32_1 = arith.constant 0 : i32
    return %c0_i32, %c0_i32_0 : i32, i32
  }
  func.func @transform_8(%arg0: i32) -> (i32, i32, i32) {
    %c0_i32 = arith.constant 0 : i32
    %c0_i32_0 = arith.constant 0 : i32
    %c0_i32_1 = arith.constant 0 : i32
    return %arg0, %c0_i32, %c0_i32_0 : i32, i32, i32
  }
}

</mosaic_0001>

<llo_original>
// kernel: tpu_custom_call.1
$region0: #{tpu_custom_call.1}
  #allocation0 [shape = 'u32[]', space=smem, size = 0x4, offset = 0x4, fixed_abs, tag = 'smem constant byte address 0x4 - core index']
  #allocation1 [shape = 'u32[144,128]{1,0:T(1,128)}', space=vmem, size = 0x12000, scoped, tag = 'internal scratch']
  %s0 = inlined_call_operand.vmem [shape: bf16[8,64,32], index: 0, kind: input, shape index: {}]
  %s1 = inlined_call_operand.vmem [shape: bf16[8,64,32], index: 1, kind: input, shape index: {}]
  %s2 = inlined_call_operand.vmem [shape: bf16[64,64], index: 2, kind: input, shape index: {}]
  %s3 = inlined_call_operand.vmem [shape: bf16[32,128], index: 3, kind: input, shape index: {}]
  %s4 = inlined_call_operand.vmem [shape: bf16[32,128], index: 4, kind: input, shape index: {}]
  %s5 = inlined_call_operand.vmem [shape: bf16[128,128], index: 5, kind: input, shape index: {}]
  %s6 = inlined_call_operand.vmem [shape: f32[1,128], index: 6, kind: input, shape index: {}]
  %s7 = inlined_call_operand.vmem [shape: f32[1,128], index: 7, kind: input, shape index: {}]
  %s8 = inlined_call_operand.hbm [shape: f32[8,64,128], index: 8, kind: output, shape index: {}]
  %s9 = sld [smem:[#allocation0]]
  $region65: #{tpu_custom_call.1} parent=0
    _
  %s11 = ssub.s32 1, %s9
  %s12 = scalar_select 0, %s11, %s9
  $region1: #{tpu_custom_call.1} parent=0
    #allocation2 [shape = 'u8[65536]{0}', space=vmem, size = 0x10000, scoped, tag = 'output window, operand 0']
    #allocation3 [shape = 's32[2]{0}', space=sflag, size = 0x8, scoped, tag = 'scoped memory for tpu_custom_call.1']
    %13 = vsyncpa [#allocation3], 0
    %s14 = scalar_lea.sflag [#allocation3], 1
    %15 = vsyncpa %s14, 0
    loop: start=0, step=1, limit=10
    $region2: #{tpu_custom_call.1} parent=1 // loop_pre_header
      _
    $region3: #{tpu_custom_call.1} parent=1 // loop_header
      %s17 = sphi 0, %s21
      %p18 = scmp.ge.s32.totalorder %s17, 10
      %s27 = sphi 0, %s29
      %s30 = sphi 0, %s27
      %s31 = sphi 0, %s30
      %s47 = sphi 0, %s31
      %s53 = sphi 0, %s55
      %s56 = sphi 0, %s53
      %s57 = sphi 0, %s56
      %s73 = sphi 0, %s57
      %s77 = sphi 0, %s77
      %s79 = sphi 0, %s77
      %s80 = sphi 0, %s79
      %s94 = sphi 0, %s80
      %s98 = sphi 0, %s98
      %s100 = sphi 0, %s98
      %s101 = sphi 0, %s100
      %s115 = sphi 0, %s101
      %s119 = sphi 0, %s119
      %s121 = sphi 0, %s119
      %s122 = sphi 0, %s121
      %s136 = sphi 0, %s122
      %s140 = sphi 0, %s140
      %s142 = sphi 0, %s140
      %s143 = sphi 0, %s142
      %s157 = sphi 0, %s143
      %s161 = sphi 0, %s161
      %s163 = sphi 0, %s161
      %s164 = sphi 0, %s163
      %s178 = sphi 0, %s164
      %s182 = sphi 0, %s182
      %s184 = sphi 0, %s182
      %s185 = sphi 0, %s184
      %s199 = sphi 0, %s185
      %s205 = sphi 0, %s207
      %s208 = sphi 0, %s205
      %s209 = sphi 0, %s208
      %s225 = sphi 0, %s209
    $region4: #{tpu_custom_call.1} parent=1 // loop_header_branch
      %20 = sbr.rel (%p18) target = $region8
    $region5: #{tpu_custom_call.1} parent=1 // loop_body
      %s22 = ssub.s32 %s17, 1
      %s23 = ssub.s32 %s17, 2
      %s24 = sadd.s32 %s17, 1
      %s25 = ssub.s32 %s17, %s24
      %p26 = scmp.eq.s32.totalorder %s25, 0
      %s28 = sadd.s32 %s27, 1
      %s29 = scalar_select %p26, %s27, %s28
      %p32 = pneg %p26
      %p33 = scmp.eq.s32.totalorder %s17, 7
      %p34 = por %p32, %p33
      %p35 = scmp.ne.s32.totalorder %s27, %s30
      %p36 = scmp.eq.s32.totalorder %s17, 0
      %p37 = por %p35, %p36
      %p38 = scmp.ne.s32.totalorder %s27, %s30
      %p39 = scmp.eq.s32.totalorder %s22, 7
      %p40 = por %p38, %p39
      %p41 = scmp.ne.s32.totalorder %s30, %s31
      %p42 = scmp.eq.s32.totalorder %s22, 0
      %p43 = por %p41, %p42
      %p44 = scmp.ne.s32.totalorder %s30, %s31
      %p45 = scmp.eq.s32.totalorder %s23, 7
      %p46 = por %p44, %p45
      %p48 = scmp.ne.s32.totalorder %s31, %s47
      %p49 = scmp.eq.s32.totalorder %s23, 0
      %p50 = por %p48, %p49
      %s51 = ssub.s32 %s17, %s24
      %p52 = scmp.eq.s32.totalorder %s51, 0
      %s54 = sadd.s32 %s53, 1
      %s55 = scalar_select %p52, %s53, %s54
      %p58 = pneg %p52
      %p59 = scmp.eq.s32.totalorder %s17, 7
      %p60 = por %p58, %p59
      %p61 = scmp.ne.s32.totalorder %s53, %s56
      %p62 = scmp.eq.s32.totalorder %s17, 0
      %p63 = por %p61, %p62
      %p64 = scmp.ne.s32.totalorder %s53, %s56
      %p65 = scmp.eq.s32.totalorder %s22, 7
      %p66 = por %p64, %p65
      %p67 = scmp.ne.s32.totalorder %s56, %s57
      %p68 = scmp.eq.s32.totalorder %s22, 0
      %p69 = por %p67, %p68
      %p70 = scmp.ne.s32.totalorder %s56, %s57
      %p71 = scmp.eq.s32.totalorder %s23, 7
      %p72 = por %p70, %p71
      %p74 = scmp.ne.s32.totalorder %s57, %s73
      %p75 = scmp.eq.s32.totalorder %s23, 0
      %p76 = por %p74, %p75
      %s78 = sadd.s32 %s77, 1
      %p81 = scmp.eq.s32.totalorder %s17, 7
      %p82 = scmp.ne.s32.totalorder %s77, %s79
      %p83 = scmp.eq.s32.totalorder %s17, 0
      %p84 = por %p82, %p83
      %p85 = scmp.ne.s32.totalorder %s77, %s79
      %p86 = scmp.eq.s32.totalorder %s22, 7
      %p87 = por %p85, %p86
      %p88 = scmp.ne.s32.totalorder %s79, %s80
      %p89 = scmp.eq.s32.totalorder %s22, 0
      %p90 = por %p88, %p89
      %p91 = scmp.ne.s32.totalorder %s79, %s80
      %p92 = scmp.eq.s32.totalorder %s23, 7
      %p93 = por %p91, %p92
      %p95 = scmp.ne.s32.totalorder %s80, %s94
      %p96 = scmp.eq.s32.totalorder %s23, 0
      %p97 = por %p95, %p96
      %s99 = sadd.s32 %s98, 1
      %p102 = scmp.eq.s32.totalorder %s17, 7
      %p103 = scmp.ne.s32.totalorder %s98, %s100
      %p104 = scmp.eq.s32.totalorder %s17, 0
      %p105 = por %p103, %p104
      %p106 = scmp.ne.s32.totalorder %s98, %s100
      %p107 = scmp.eq.s32.totalorder %s22, 7
      %p108 = por %p106, %p107
      %p109 = scmp.ne.s32.totalorder %s100, %s101
      %p110 = scmp.eq.s32.totalorder %s22, 0
      %p111 = por %p109, %p110
      %p112 = scmp.ne.s32.totalorder %s100, %s101
      %p113 = scmp.eq.s32.totalorder %s23, 7
      %p114 = por %p112, %p113
      %p116 = scmp.ne.s32.totalorder %s101, %s115
      %p117 = scmp.eq.s32.totalorder %s23, 0
      %p118 = por %p116, %p117
      %s120 = sadd.s32 %s119, 1
      %p123 = scmp.eq.s32.totalorder %s17, 7
      %p124 = scmp.ne.s32.totalorder %s119, %s121
      %p125 = scmp.eq.s32.totalorder %s17, 0
      %p126 = por %p124, %p125
      %p127 = scmp.ne.s32.totalorder %s119, %s121
      %p128 = scmp.eq.s32.totalorder %s22, 7
      %p129 = por %p127, %p128
      %p130 = scmp.ne.s32.totalorder %s121, %s122
      %p131 = scmp.eq.s32.totalorder %s22, 0
      %p132 = por %p130, %p131
      %p133 = scmp.ne.s32.totalorder %s121, %s122
      %p134 = scmp.eq.s32.totalorder %s23, 7
      %p135 = por %p133, %p134
      %p137 = scmp.ne.s32.totalorder %s122, %s136
      %p138 = scmp.eq.s32.totalorder %s23, 0
      %p139 = por %p137, %p138
      %s141 = sadd.s32 %s140, 1
      %p144 = scmp.eq.s32.totalorder %s17, 7
      %p145 = scmp.ne.s32.totalorder %s140, %s142
      %p146 = scmp.eq.s32.totalorder %s17, 0
      %p147 = por %p145, %p146
      %p148 = scmp.ne.s32.totalorder %s140, %s142
      %p149 = scmp.eq.s32.totalorder %s22, 7
      %p150 = por %p148, %p149
      %p151 = scmp.ne.s32.totalorder %s142, %s143
      %p152 = scmp.eq.s32.totalorder %s22, 0
      %p153 = por %p151, %p152
      %p154 = scmp.ne.s32.totalorder %s142, %s143
      %p155 = scmp.eq.s32.totalorder %s23, 7
      %p156 = por %p154, %p155
      %p158 = scmp.ne.s32.totalorder %s143, %s157
      %p159 = scmp.eq.s32.totalorder %s23, 0
      %p160 = por %p158, %p159
      %s162 = sadd.s32 %s161, 1
      %p165 = scmp.eq.s32.totalorder %s17, 7
      %p166 = scmp.ne.s32.totalorder %s161, %s163
      %p167 = scmp.eq.s32.totalorder %s17, 0
      %p168 = por %p166, %p167
      %p169 = scmp.ne.s32.totalorder %s161, %s163
      %p170 = scmp.eq.s32.totalorder %s22, 7
      %p171 = por %p169, %p170
      %p172 = scmp.ne.s32.totalorder %s163, %s164
      %p173 = scmp.eq.s32.totalorder %s22, 0
      %p174 = por %p172, %p173
      %p175 = scmp.ne.s32.totalorder %s163, %s164
      %p176 = scmp.eq.s32.totalorder %s23, 7
      %p177 = por %p175, %p176
      %p179 = scmp.ne.s32.totalorder %s164, %s178
      %p180 = scmp.eq.s32.totalorder %s23, 0
      %p181 = por %p179, %p180
      %s183 = sadd.s32 %s182, 1
      %p186 = scmp.eq.s32.totalorder %s17, 7
      %p187 = scmp.ne.s32.totalorder %s182, %s184
      %p188 = scmp.eq.s32.totalorder %s17, 0
      %p189 = por %p187, %p188
      %p190 = scmp.ne.s32.totalorder %s182, %s184
      %p191 = scmp.eq.s32.totalorder %s22, 7
      %p192 = por %p190, %p191
      %p193 = scmp.ne.s32.totalorder %s184, %s185
      %p194 = scmp.eq.s32.totalorder %s22, 0
      %p195 = por %p193, %p194
      %p196 = scmp.ne.s32.totalorder %s184, %s185
      %p197 = scmp.eq.s32.totalorder %s23, 7
      %p198 = por %p196, %p197
      %p200 = scmp.ne.s32.totalorder %s185, %s199
      %p201 = scmp.eq.s32.totalorder %s23, 0
      %p202 = por %p200, %p201
      %s203 = ssub.s32 %s17, %s24
      %p204 = scmp.eq.s32.totalorder %s203, 0
      %s206 = sadd.s32 %s205, 1
      %s207 = scalar_select %p204, %s205, %s206
      %p210 = pneg %p204
      %p211 = scmp.eq.s32.totalorder %s17, 7
      %p212 = por %p210, %p211
      %p213 = scmp.ne.s32.totalorder %s205, %s208
      %p214 = scmp.eq.s32.totalorder %s17, 0
      %p215 = por %p213, %p214
      %p216 = scmp.ne.s32.totalorder %s205, %s208
      %p217 = scmp.eq.s32.totalorder %s22, 7
      %p218 = por %p216, %p217
      %p219 = scmp.ne.s32.totalorder %s208, %s209
      %p220 = scmp.eq.s32.totalorder %s22, 0
      %p221 = por %p219, %p220
      %p222 = scmp.ne.s32.totalorder %s208, %s209
      %p223 = scmp.eq.s32.totalorder %s23, 7
      %p224 = por %p222, %p223
      %p226 = scmp.ne.s32.totalorder %s209, %s225
      %p227 = scmp.eq.s32.totalorder %s23, 0
      %p228 = por %p226, %p227
      %p229 = scmp.le.s32.totalorder 1, %s17
      %p230 = scmp.lt.s32.totalorder %s17, 9
      %p231 = pnand %p229, %p230
      %p232 = pneg %p231
      // Predicated region
      $region9: #{tpu_custom_call.1} parent=5 // pred_check
        _
      $region10: #{tpu_custom_call.1} parent=5 // pred_check_branch
        %234 = sbr.rel (%p231) target = $region12
      $region11: #{tpu_custom_call.1} parent=5 // pred_region
        %s235 = ssub.s32 %s17, 1
        // Predicated region
        $region13: #{tpu_custom_call.1} parent=11 // pred_check
          %p236 = pneg %p90
        $region14: #{tpu_custom_call.1} parent=11 // pred_check_branch
          %238 = sbr.rel (%p236) target = $region16
        $region15: #{tpu_custom_call.1} parent=11 // pred_region
          _
        $region16: #{tpu_custom_call.1} parent=11 // pred_fallthru
          _
        // Predicated region
        $region17: #{tpu_custom_call.1} parent=11 // pred_check
          %p239 = pneg %p111
        $region18: #{tpu_custom_call.1} parent=11 // pred_check_branch
          %241 = sbr.rel (%p239) target = $region20
        $region19: #{tpu_custom_call.1} parent=11 // pred_region
          _
        $region20: #{tpu_custom_call.1} parent=11 // pred_fallthru
          _
        // Predicated region
        $region21: #{tpu_custom_call.1} parent=11 // pred_check
          %p242 = pneg %p132
        $region22: #{tpu_custom_call.1} parent=11 // pred_check_branch
          %244 = sbr.rel (%p242) target = $region24
        $region23: #{tpu_custom_call.1} parent=11 // pred_region
          _
        $region24: #{tpu_custom_call.1} parent=11 // pred_fallthru
          _
        // Predicated region
        $region25: #{tpu_custom_call.1} parent=11 // pred_check
          %p245 = pneg %p153
        $region26: #{tpu_custom_call.1} parent=11 // pred_check_branch
          %247 = sbr.rel (%p245) target = $region28
        $region27: #{tpu_custom_call.1} parent=11 // pred_region
          _
        $region28: #{tpu_custom_call.1} parent=11 // pred_fallthru
          _
        // Predicated region
        $region29: #{tpu_custom_call.1} parent=11 // pred_check
          %p248 = pneg %p174
        $region30: #{tpu_custom_call.1} parent=11 // pred_check_branch
          %250 = sbr.rel (%p248) target = $region32
        $region31: #{tpu_custom_call.1} parent=11 // pred_region
          _
        $region32: #{tpu_custom_call.1} parent=11 // pred_fallthru
          _
        // Predicated region
        $region33: #{tpu_custom_call.1} parent=11 // pred_check
          %p251 = pneg %p195
        $region34: #{tpu_custom_call.1} parent=11 // pred_check_branch
          %253 = sbr.rel (%p251) target = $region36
        $region35: #{tpu_custom_call.1} parent=11 // pred_region
          _
        $region36: #{tpu_custom_call.1} parent=11 // pred_fallthru
          _
      $region12: #{tpu_custom_call.1} parent=5 // pred_fallthru
        _
      %p254 = scmp.lt.s32.totalorder %s17, 8
      // Predicated region
      $region37: #{tpu_custom_call.1} parent=5 // pred_check
        %p255 = pneg %p254
      $region38: #{tpu_custom_call.1} parent=5 // pred_check_branch
        %257 = sbr.rel (%p255) target = $region40
      $region39: #{tpu_custom_call.1} parent=5 // pred_region
        // Predicated region
        $region41: #{tpu_custom_call.1} parent=39 // pred_check
          %p258 = pneg %p37
        $region42: #{tpu_custom_call.1} parent=39 // pred_check_branch
          %260 = sbr.rel (%p258) target = $region44
        $region43: #{tpu_custom_call.1} parent=39 // pred_region
          %p261 = scmp.lt.s32.totalorder %s17, 7
          %s262 = scalar_select %p261, %s17, 7
          %s263 = smul.addr %s262, 8
          %s264 = smul.addr %s263, 4
          %s265 = scalar_lea.vmem %s0, %s264
        $region44: #{tpu_custom_call.1} parent=39 // pred_fallthru
          _
        // Predicated region
        $region45: #{tpu_custom_call.1} parent=39 // pred_check
          %p266 = pneg %p63
        $region46: #{tpu_custom_call.1} parent=39 // pred_check_branch
          %268 = sbr.rel (%p266) target = $region48
        $region47: #{tpu_custom_call.1} parent=39 // pred_region
          %p269 = scmp.lt.s32.totalorder %s17, 7
          %s270 = scalar_select %p269, %s17, 7
          %s271 = smul.addr %s270, 8
          %s272 = smul.addr %s271, 4
          %s273 = scalar_lea.vmem %s1, %s272
        $region48: #{tpu_custom_call.1} parent=39 // pred_fallthru
          _
      $region40: #{tpu_custom_call.1} parent=5 // pred_fallthru
        _
      %p274 = scmp.le.s32.totalorder 1, %s17
      %p275 = scmp.lt.s32.totalorder %s17, 9
      %p276 = pnand %p274, %p275
      %p277 = pneg %p276
      // Predicated region
      $region49: #{tpu_custom_call.1} parent=5 // pred_check
        _
      $region50: #{tpu_custom_call.1} parent=5 // pred_check_branch
        %279 = sbr.rel (%p276) target = $region52
      $region51: #{tpu_custom_call.1} parent=5 // pred_region
        %s280 = ssub.s32 %s17, 1
        %p281 = scmp.lt.s32.totalorder %s22, 7
        %s282 = scalar_select %p281, %s22, 7
        %s283 = smul.addr %s282, 8
        %s284 = smul.addr %s283, 4
        %s285 = scalar_lea.vmem %s0, %s284
        %p286 = pneg %p43
        %p287 = pneg %p40
        %p288 = scmp.lt.s32.totalorder %s22, 7
        %s289 = scalar_select %p288, %s22, 7
        %s290 = smul.addr %s289, 8
        %s291 = smul.addr %s290, 4
        %s292 = scalar_lea.vmem %s1, %s291
        %p293 = pneg %p69
        %p294 = pneg %p66
        %p295 = pneg %p90
        %p296 = pneg %p87
        %p297 = pneg %p111
        %p298 = pneg %p108
        %p299 = pneg %p132
        %p300 = pneg %p129
        %p301 = pneg %p153
        %p302 = pneg %p150
        %p303 = pneg %p174
        %p304 = pneg %p171
        %p305 = pneg %p195
        %p306 = pneg %p192
        %p307 = pneg %p221
        %p308 = pneg %p218
        %s309 = sand.u32 %s208, 1
        %s310 = scalar_lea.sflag [#allocation3], %s309
        %s311 = sand.u32 %s208, 1
        %s312 = smul.addr %s311, 64
        %s313 = scalar_lea.vmem [#allocation2], %s312
        %p314 = scmp.lt.s32.totalorder %s22, 7
        %s315 = scalar_select %p314, %s22, 7
        %s316 = smul.addr %s315, 8
        %s317 = smul.addr %s316, 4
        %s318 = scalar_lea.vmem %s0, %s317
        %p319 = scmp.lt.s32.totalorder %s22, 7
        %s320 = scalar_select %p319, %s22, 7
        %s321 = smul.addr %s320, 8
        %s322 = smul.addr %s321, 4
        %s323 = scalar_lea.vmem %s1, %s322
        %v325 = vld [vmem:[%s318] sm:$0xf]
        %v326 = vld [vmem:[%s318 + $0x4] sm:$0xf]
        %v327 = vld [vmem:[%s318 + $0x8] sm:$0xf]
        %v328 = vld [vmem:[%s318 + $0xc] sm:$0xf]
        %v329 = vld [vmem:[%s318 + $0x10] sm:$0xf]
        %v330 = vld [vmem:[%s318 + $0x14] sm:$0xf]
        %v331 = vld [vmem:[%s318 + $0x18] sm:$0xf]
        %v332 = vld [vmem:[%s318 + $0x1c] sm:$0xf]
        %v333 = vld [vmem:[%s323] sm:$0xf]
        %v334 = vld [vmem:[%s323 + $0x4] sm:$0xf]
        %v335 = vld [vmem:[%s323 + $0x8] sm:$0xf]
        %v336 = vld [vmem:[%s323 + $0xc] sm:$0xf]
        %v337 = vld [vmem:[%s323 + $0x10] sm:$0xf]
        %v338 = vld [vmem:[%s323 + $0x14] sm:$0xf]
        %v339 = vld [vmem:[%s323 + $0x18] sm:$0xf]
        %v340 = vld [vmem:[%s323 + $0x1c] sm:$0xf]
        %v341 = vld [vmem:[%s2] sm:$0xf]
        %v342 = vld [vmem:[%s2 + $0x4] sm:$0xf]
        %v343 = vld [vmem:[%s2 + $0x8] sm:$0xf]
        %v344 = vld [vmem:[%s2 + $0xc] sm:$0xf]
        %v345 = vld [vmem:[%s2 + $0x10] sm:$0xf]
        %v346 = vld [vmem:[%s2 + $0x14] sm:$0xf]
        %v347 = vld [vmem:[%s2 + $0x18] sm:$0xf]
        %v348 = vld [vmem:[%s2 + $0x1c] sm:$0xf]
        %v349 = vld [vmem:[%s6] sm:$0x1]
        %v350 = vld [vmem:[%s7] sm:$0x1]
        %v351 = vld [vmem:[%s3] sm:$0xf]
        %v352 = vld [vmem:[%s3 + $0x4] sm:$0xf]
        %v353 = vld [vmem:[%s3 + $0x8] sm:$0xf]
        %v354 = vld [vmem:[%s3 + $0xc] sm:$0xf]
        %v355 = vld [vmem:[%s4] sm:$0xf]
        %v356 = vld [vmem:[%s4 + $0x4] sm:$0xf]
        %v357 = vld [vmem:[%s4 + $0x8] sm:$0xf]
        %v358 = vld [vmem:[%s4 + $0xc] sm:$0xf]
        %v367 = vunpack.c.l.b16 %v333
        %v368 = vunpack.c.l.b16 %v334
        %v369 = vunpack.c.l.b16 %v335
        %v370 = vunpack.c.l.b16 %v336
        %v371 = vunpack.c.l.b16 %v337
        %v372 = vunpack.c.l.b16 %v338
        %v373 = vunpack.c.l.b16 %v339
        %v374 = vunpack.c.l.b16 %v340
        %v375 = vpack.c.b16 %v368, %v367
        %v376 = vpack.c.b16 %v370, %v369
        %v377 = vpack.c.b16 %v372, %v371
        %v378 = vpack.c.b16 %v374, %v373
        %v383 = vunpack.c.l.b16 %v355
        %v384 = vunpack.c.l.b16 %v356
        %v385 = vunpack.c.l.b16 %v357
        %v386 = vunpack.c.l.b16 %v358
        %v387 = vpack.c.b16 %v384, %v383
        %v388 = vpack.c.b16 %v386, %v385
        %vm391 = vcmask 261120
        %v393 = vsel %vm391, %v375, 0
        %v396 = vsel %vm391, %v376, 0
        %v399 = vsel %vm391, %v377, 0
        %v402 = vsel %vm391, %v378, 0
        %404 = vmatprep.subr.bf16.mxu0 0
        %405 = vmatpush1.bf16.msra.mxu0 %v387
        %406 = vmatprep.subr.bf16.mxu0 0
        %407 = vmatpush1.bf16.msra.mxu0 %v388
        %408 = vmatprep.subr.bf16.mxu0 0
        %409 = vmatpush1.bf16.msra.mxu0 0
        %410 = vmatprep.subr.bf16.mxu0 0
        %411 = vmatpush1.bf16.msra.mxu0 0
        %412 = vmatprep.subr.bf16.mxu0 0
        %413 = vmatpush1.bf16.msra.mxu0 0
        %414 = vmatprep.subr.bf16.mxu0 0
        %415 = vmatpush1.bf16.msra.mxu0 0
        %416 = vmatprep.subr.bf16.mxu0 0
        %417 = vmatpush1.bf16.msra.mxu0 0
        %418 = vmatprep.subr.bf16.mxu0 0
        %419 = vmatpush1.bf16.msra.mxu0 0
        %420 = vmatprep.subr.bf16.mxu0 0
        %421 = vmatpush1.bf16.msra.mxu0 0
        %422 = vmatprep.subr.bf16.mxu0 0
        %423 = vmatpush1.bf16.msra.mxu0 0
        %424 = vmatprep.subr.bf16.mxu0 0
        %425 = vmatpush1.bf16.msra.mxu0 0
        %426 = vmatprep.subr.bf16.mxu0 0
        %427 = vmatpush1.bf16.msra.mxu0 0
        %428 = vmatprep.subr.bf16.mxu0 0
        %429 = vmatpush1.bf16.msra.mxu0 0
        %430 = vmatprep.subr.bf16.mxu0 0
        %431 = vmatpush1.bf16.msra.mxu0 0
        %432 = vmatprep.subr.bf16.mxu0 0
        %433 = vmatpush1.bf16.msra.mxu0 0
        %434 = vmatprep.subr.bf16.mxu0 0
        %435 = vmatpush1.bf16.msra.mxu0 0
        %436 = vmatprep.mubr.bf16.mxu0 0
        %437 = vmatmul.mubr.bf16.gmra.mrb[0].mxu0 %v393
        %v438 = vpop.f32.mrb[0].mxu0
        %v439 = vadd.f32 0.0, %v438
        %v440 = vpop.f32.mrb[0].mxu0
        %v441 = vpop.f32.mrb[0].mxu0
        %v442 = vadd.f32 0.0, %v441
        %v443 = vpop.f32.mrb[0].mxu0
        %444 = vmatprep.mubr.bf16.mxu0 0
        %445 = vmatmul.mubr.bf16.gmra.mrb[0].mxu0 %v396
        %v446 = vpop.f32.mrb[0].mxu0
        %v447 = vadd.f32 0.0, %v446
        %v448 = vpop.f32.mrb[0].mxu0
        %v449 = vpop.f32.mrb[0].mxu0
        %v450 = vadd.f32 0.0, %v449
        %v451 = vpop.f32.mrb[0].mxu0
        %452 = vmatprep.mubr.bf16.mxu0 0
        %453 = vmatmul.mubr.bf16.gmra.mrb[0].mxu0 %v399
        %v454 = vpop.f32.mrb[0].mxu0
        %v455 = vadd.f32 0.0, %v454
        %v456 = vpop.f32.mrb[0].mxu0
        %v457 = vpop.f32.mrb[0].mxu0
        %v458 = vadd.f32 0.0, %v457
        %v459 = vpop.f32.mrb[0].mxu0
        %460 = vmatprep.mubr.bf16.mxu0 0
        %461 = vmatmul.mubr.bf16.gmra.mrb[0].mxu0 %v402
        %v462 = vpop.f32.mrb[0].mxu0
        %v463 = vadd.f32 0.0, %v462
        %v464 = vpop.f32.mrb[0].mxu0
        %v465 = vpop.f32.mrb[0].mxu0
        %v466 = vadd.f32 0.0, %v465
        %v467 = vpop.f32.mrb[0].mxu0
        %468 = vdwg.mxu0
        %v477 = vunpack.c.l.b16 %v325
        %v478 = vunpack.c.l.b16 %v326
        %v479 = vunpack.c.l.b16 %v327
        %v480 = vunpack.c.l.b16 %v328
        %v481 = vunpack.c.l.b16 %v329
        %v482 = vunpack.c.l.b16 %v330
        %v483 = vunpack.c.l.b16 %v331
        %v484 = vunpack.c.l.b16 %v332
        %v485 = vpack.c.b16 %v478, %v477
        %v486 = vpack.c.b16 %v480, %v479
        %v487 = vpack.c.b16 %v482, %v481
        %v488 = vpack.c.b16 %v484, %v483
        %v493 = vunpack.c.l.b16 %v351
        %v494 = vunpack.c.l.b16 %v352
        %v495 = vunpack.c.l.b16 %v353
        %v496 = vunpack.c.l.b16 %v354
        %v497 = vpack.c.b16 %v494, %v493
        %v498 = vpack.c.b16 %v496, %v495
        %v502 = vsel %vm391, %v485, 0
        %v505 = vsel %vm391, %v486, 0
        %v508 = vsel %vm391, %v487, 0
        %v511 = vsel %vm391, %v488, 0
        %513 = vmatprep.subr.bf16.mxu0 0
        %514 = vmatpush1.bf16.msra.mxu0 %v497
        %515 = vmatprep.subr.bf16.mxu0 0
        %516 = vmatpush1.bf16.msra.mxu0 %v498
        %517 = vmatprep.subr.bf16.mxu0 0
        %518 = vmatpush1.bf16.msra.mxu0 0
        %519 = vmatprep.subr.bf16.mxu0 0
        %520 = vmatpush1.bf16.msra.mxu0 0
        %521 = vmatprep.subr.bf16.mxu0 0
        %522 = vmatpush1.bf16.msra.mxu0 0
        %523 = vmatprep.subr.bf16.mxu0 0
        %524 = vmatpush1.bf16.msra.mxu0 0
        %525 = vmatprep.subr.bf16.mxu0 0
        %526 = vmatpush1.bf16.msra.mxu0 0
        %527 = vmatprep.subr.bf16.mxu0 0
        %528 = vmatpush1.bf16.msra.mxu0 0
        %529 = vmatprep.subr.bf16.mxu0 0
        %530 = vmatpush1.bf16.msra.mxu0 0
        %531 = vmatprep.subr.bf16.mxu0 0
        %532 = vmatpush1.bf16.msra.mxu0 0
        %533 = vmatprep.subr.bf16.mxu0 0
        %534 = vmatpush1.bf16.msra.mxu0 0
        %535 = vmatprep.subr.bf16.mxu0 0
        %536 = vmatpush1.bf16.msra.mxu0 0
        %537 = vmatprep.subr.bf16.mxu0 0
        %538 = vmatpush1.bf16.msra.mxu0 0
        %539 = vmatprep.subr.bf16.mxu0 0
        %540 = vmatpush1.bf16.msra.mxu0 0
        %541 = vmatprep.subr.bf16.mxu0 0
        %542 = vmatpush1.bf16.msra.mxu0 0
        %543 = vmatprep.subr.bf16.mxu0 0
        %544 = vmatpush1.bf16.msra.mxu0 0
        %545 = vmatprep.mubr.bf16.mxu0 0
        %546 = vmatmul.mubr.bf16.gmra.mrb[0].mxu0 %v502
        %v547 = vpop.f32.mrb[0].mxu0
        %v548 = vadd.f32 %v439, %v547
        %v549 = vpop.f32.mrb[0].mxu0
        %v550 = vpop.f32.mrb[0].mxu0
        %v551 = vadd.f32 %v442, %v550
        %v552 = vpop.f32.mrb[0].mxu0
        %553 = vmatprep.mubr.bf16.mxu0 0
        %554 = vmatmul.mubr.bf16.gmra.mrb[0].mxu0 %v505
        %v555 = vpop.f32.mrb[0].mxu0
        %v556 = vadd.f32 %v447, %v555
        %v557 = vpop.f32.mrb[0].mxu0
        %v558 = vpop.f32.mrb[0].mxu0
        %v559 = vadd.f32 %v450, %v558
        %v560 = vpop.f32.mrb[0].mxu0
        %561 = vmatprep.mubr.bf16.mxu0 0
        %562 = vmatmul.mubr.bf16.gmra.mrb[0].mxu0 %v508
        %v563 = vpop.f32.mrb[0].mxu0
        %v564 = vadd.f32 %v455, %v563
        %v565 = vpop.f32.mrb[0].mxu0
        %v566 = vpop.f32.mrb[0].mxu0
        %v567 = vadd.f32 %v458, %v566
        %v568 = vpop.f32.mrb[0].mxu0
        %569 = vmatprep.mubr.bf16.mxu0 0
        %570 = vmatmul.mubr.bf16.gmra.mrb[0].mxu0 %v511
        %v571 = vpop.f32.mrb[0].mxu0
        %v572 = vadd.f32 %v463, %v571
        %v573 = vpop.f32.mrb[0].mxu0
        %v574 = vpop.f32.mrb[0].mxu0
        %v575 = vadd.f32 %v466, %v574
        %v576 = vpop.f32.mrb[0].mxu0
        %577 = vdwg.mxu0
        %v578 = vpack.c.bf16 %v551, %v548
        %v579 = vpack.c.bf16 %v559, %v556
        %v580 = vpack.c.bf16 %v567, %v564
        %v581 = vpack.c.bf16 %v575, %v572
        %v583 = vlaneseq
        %v584 = vshrl.u32 %v583, 7
        %v585 = vsub.s32 0, %v584
        %v586 = vrot.slane %v349, %v585
        %v596 = vunpack.c.l.b16 %v341
        %v597 = vunpack.c.l.b16 %v342
        %v598 = vunpack.c.l.b16 %v343
        %v599 = vunpack.c.l.b16 %v344
        %v600 = vunpack.c.l.b16 %v345
        %v601 = vunpack.c.l.b16 %v346
        %v602 = vunpack.c.l.b16 %v347
        %v603 = vunpack.c.l.b16 %v348
        %v604 = vpack.c.b16 %v597, %v596
        %v605 = vpack.c.b16 %v599, %v598
        %v606 = vpack.c.b16 %v601, %v600
        %v607 = vpack.c.b16 %v603, %v602
        %vm608 = vcmask 523264
        %v610 = vsel %vm608, %v604, 0
        %v613 = vsel %vm608, %v605, 0
        %v616 = vsel %vm608, %v606, 0
        %v619 = vsel %vm608, %v607, 0
        %621 = vmatprep.subr.bf16.mxu0 0
        %622 = vmatpush1.bf16.msra.mxu0 %v578
        %623 = vmatprep.subr.bf16.mxu0 0
        %624 = vmatpush1.bf16.msra.mxu0 %v579
        %625 = vmatprep.subr.bf16.mxu0 0
        %626 = vmatpush1.bf16.msra.mxu0 %v580
        %627 = vmatprep.subr.bf16.mxu0 0
        %628 = vmatpush1.bf16.msra.mxu0 %v581
        %629 = vmatprep.subr.bf16.mxu0 0
        %630 = vmatpush1.bf16.msra.mxu0 0
        %631 = vmatprep.subr.bf16.mxu0 0
        %632 = vmatpush1.bf16.msra.mxu0 0
        %633 = vmatprep.subr.bf16.mxu0 0
        %634 = vmatpush1.bf16.msra.mxu0 0
        %635 = vmatprep.subr.bf16.mxu0 0
        %636 = vmatpush1.bf16.msra.mxu0 0
        %637 = vmatprep.subr.bf16.mxu0 0
        %638 = vmatpush1.bf16.msra.mxu0 0
        %639 = vmatprep.subr.bf16.mxu0 0
        %640 = vmatpush1.bf16.msra.mxu0 0
        %641 = vmatprep.subr.bf16.mxu0 0
        %642 = vmatpush1.bf16.msra.mxu0 0
        %643 = vmatprep.subr.bf16.mxu0 0
        %644 = vmatpush1.bf16.msra.mxu0 0
        %645 = vmatprep.subr.bf16.mxu0 0
        %646 = vmatpush1.bf16.msra.mxu0 0
        %647 = vmatprep.subr.bf16.mxu0 0
        %648 = vmatpush1.bf16.msra.mxu0 0
        %649 = vmatprep.subr.bf16.mxu0 0
        %650 = vmatpush1.bf16.msra.mxu0 0
        %651 = vmatprep.subr.bf16.mxu0 0
        %652 = vmatpush1.bf16.msra.mxu0 0
        %653 = vmatprep.mubr.bf16.mxu0 0
        %654 = vmatmul.mubr.bf16.gmra.mrb[0].mxu0 %v610
        %v655 = vpop.f32.mrb[0].mxu0
        %v656 = vadd.f32 %v586, %v655
        %v657 = vpop.f32.mrb[0].mxu0
        %v658 = vpop.f32.mrb[0].mxu0
        %v659 = vadd.f32 %v586, %v658
        %v660 = vpop.f32.mrb[0].mxu0
        %661 = vmatprep.mubr.bf16.mxu0 0
        %662 = vmatmul.mubr.bf16.gmra.mrb[0].mxu0 %v613
        %v663 = vpop.f32.mrb[0].mxu0
        %v664 = vadd.f32 %v586, %v663
        %v665 = vpop.f32.mrb[0].mxu0
        %v666 = vpop.f32.mrb[0].mxu0
        %v667 = vadd.f32 %v586, %v666
        %v668 = vpop.f32.mrb[0].mxu0
        %669 = vmatprep.mubr.bf16.mxu0 0
        %670 = vmatmul.mubr.bf16.gmra.mrb[0].mxu0 %v616
        %v671 = vpop.f32.mrb[0].mxu0
        %v672 = vadd.f32 %v586, %v671
        %v673 = vpop.f32.mrb[0].mxu0
        %v674 = vpop.f32.mrb[0].mxu0
        %v675 = vadd.f32 %v586, %v674
        %v676 = vpop.f32.mrb[0].mxu0
        %677 = vmatprep.mubr.bf16.mxu0 0
        %678 = vmatmul.mubr.bf16.gmra.mrb[0].mxu0 %v619
        %v679 = vpop.f32.mrb[0].mxu0
        %v680 = vadd.f32 %v586, %v679
        %v681 = vpop.f32.mrb[0].mxu0
        %v682 = vpop.f32.mrb[0].mxu0
        %v683 = vadd.f32 %v586, %v682
        %v684 = vpop.f32.mrb[0].mxu0
        %685 = vdwg.mxu0
        %v686 = vmax.f32 %v656, 0.0
        %v687 = vmax.f32 %v659, 0.0
        %v688 = vmax.f32 %v664, 0.0
        %v689 = vmax.f32 %v667, 0.0
        %v690 = vmax.f32 %v672, 0.0
        %v691 = vmax.f32 %v675, 0.0
        %v692 = vmax.f32 %v680, 0.0
        %v693 = vmax.f32 %v683, 0.0
        %vm694 = vcmp.ne.f32.partialorder %v656, %v656
        %vm695 = vcmp.ne.f32.partialorder %v659, %v659
        %vm696 = vcmp.ne.f32.partialorder %v664, %v664
        %vm697 = vcmp.ne.f32.partialorder %v667, %v667
        %vm698 = vcmp.ne.f32.partialorder %v672, %v672
        %vm699 = vcmp.ne.f32.partialorder %v675, %v675
        %vm700 = vcmp.ne.f32.partialorder %v680, %v680
        %vm701 = vcmp.ne.f32.partialorder %v683, %v683
        %v702 = vadd.f32 %v656, 0.0
        %v703 = vadd.f32 %v659, 0.0
        %v704 = vadd.f32 %v664, 0.0
        %v705 = vadd.f32 %v667, 0.0
        %v706 = vadd.f32 %v672, 0.0
        %v707 = vadd.f32 %v675, 0.0
        %v708 = vadd.f32 %v680, 0.0
        %v709 = vadd.f32 %v683, 0.0
        %v710 = vand.u32 2147483647, %v656
        %v711 = vand.u32 2147483647, %v659
        %v712 = vand.u32 2147483647, %v664
        %v713 = vand.u32 2147483647, %v667
        %v714 = vand.u32 2147483647, %v672
        %v715 = vand.u32 2147483647, %v675
        %v716 = vand.u32 2147483647, %v680
        %v717 = vand.u32 2147483647, %v683
        %v718 = vsub.f32 0.0, %v710
        %v719 = vsub.f32 0.0, %v711
        %v720 = vsub.f32 0.0, %v712
        %v721 = vsub.f32 0.0, %v713
        %v722 = vsub.f32 0.0, %v714
        %v723 = vsub.f32 0.0, %v715
        %v724 = vsub.f32 0.0, %v716
        %v725 = vsub.f32 0.0, %v717
        %v726 = vmul.f32 %v718, 1.442695
        %v727 = vpow.pop %v726
        %v728 = vmul.f32 %v719, 1.442695
        %v729 = vpow.pop %v728
        %v730 = vmul.f32 %v720, 1.442695
        %v731 = vpow.pop %v730
        %v732 = vmul.f32 %v721, 1.442695
        %v733 = vpow.pop %v732
        %v734 = vmul.f32 %v722, 1.442695
        %v735 = vpow.pop %v734
        %v736 = vmul.f32 %v723, 1.442695
        %v737 = vpow.pop %v736
        %v738 = vmul.f32 %v724, 1.442695
        %v739 = vpow.pop %v738
        %v740 = vmul.f32 %v725, 1.442695
        %v741 = vpow.pop %v740
        %v742 = vadd.f32 %v727, 1.0
        %v743 = vlog2.pop %v742
        %v744 = vmul.f32 %v743, 0.6931472
        %v745 = vmul.f32 -0.5, %v727
        %v746 = vadd.f32 %v745, 1.0
        %v747 = vmul.f32 %v746, %v727
        %v748 = vand.u32 2147483647, %v727
        %vm749 = vcmp.lt.f32.partialorder %v748, 0.0004427343
        %v750 = vsel %vm749, %v747, %v744
        %v751 = vadd.f32 %v729, 1.0
        %v752 = vlog2.pop %v751
        %v753 = vmul.f32 %v752, 0.6931472
        %v754 = vmul.f32 -0.5, %v729
        %v755 = vadd.f32 %v754, 1.0
        %v756 = vmul.f32 %v755, %v729
        %v757 = vand.u32 2147483647, %v729
        %vm758 = vcmp.lt.f32.partialorder %v757, 0.0004427343
        %v759 = vsel %vm758, %v756, %v753
        %v760 = vadd.f32 %v731, 1.0
        %v761 = vlog2.pop %v760
        %v762 = vmul.f32 %v761, 0.6931472
        %v763 = vmul.f32 -0.5, %v731
        %v764 = vadd.f32 %v763, 1.0
        %v765 = vmul.f32 %v764, %v731
        %v766 = vand.u32 2147483647, %v731
        %vm767 = vcmp.lt.f32.partialorder %v766, 0.0004427343
        %v768 = vsel %vm767, %v765, %v762
        %v769 = vadd.f32 %v733, 1.0
        %v770 = vlog2.pop %v769
        %v771 = vmul.f32 %v770, 0.6931472
        %v772 = vmul.f32 -0.5, %v733
        %v773 = vadd.f32 %v772, 1.0
        %v774 = vmul.f32 %v773, %v733
        %v775 = vand.u32 2147483647, %v733
        %vm776 = vcmp.lt.f32.partialorder %v775, 0.0004427343
        %v777 = vsel %vm776, %v774, %v771
        %v778 = vadd.f32 %v735, 1.0
        %v779 = vlog2.pop %v778
        %v780 = vmul.f32 %v779, 0.6931472
        %v781 = vmul.f32 -0.5, %v735
        %v782 = vadd.f32 %v781, 1.0
        %v783 = vmul.f32 %v782, %v735
        %v784 = vand.u32 2147483647, %v735
        %vm785 = vcmp.lt.f32.partialorder %v784, 0.0004427343
        %v786 = vsel %vm785, %v783, %v780
        %v787 = vadd.f32 %v737, 1.0
        %v788 = vlog2.pop %v787
        %v789 = vmul.f32 %v788, 0.6931472
        %v790 = vmul.f32 -0.5, %v737
        %v791 = vadd.f32 %v790, 1.0
        %v792 = vmul.f32 %v791, %v737
        %v793 = vand.u32 2147483647, %v737
        %vm794 = vcmp.lt.f32.partialorder %v793, 0.0004427343
        %v795 = vsel %vm794, %v792, %v789
        %v796 = vadd.f32 %v739, 1.0
        %v797 = vlog2.pop %v796
        %v798 = vmul.f32 %v797, 0.6931472
        %v799 = vmul.f32 -0.5, %v739
        %v800 = vadd.f32 %v799, 1.0
        %v801 = vmul.f32 %v800, %v739
        %v802 = vand.u32 2147483647, %v739
        %vm803 = vcmp.lt.f32.partialorder %v802, 0.0004427343
        %v804 = vsel %vm803, %v801, %v798
        %v805 = vadd.f32 %v741, 1.0
        %v806 = vlog2.pop %v805
        %v807 = vmul.f32 %v806, 0.6931472
        %v808 = vmul.f32 -0.5, %v741
        %v809 = vadd.f32 %v808, 1.0
        %v810 = vmul.f32 %v809, %v741
        %v811 = vand.u32 2147483647, %v741
        %vm812 = vcmp.lt.f32.partialorder %v811, 0.0004427343
        %v813 = vsel %vm812, %v810, %v807
        %v814 = vadd.f32 %v686, %v750
        %v815 = vadd.f32 %v687, %v759
        %v816 = vadd.f32 %v688, %v768
        %v817 = vadd.f32 %v689, %v777
        %v818 = vadd.f32 %v690, %v786
        %v819 = vadd.f32 %v691, %v795
        %v820 = vadd.f32 %v692, %v804
        %v821 = vadd.f32 %v693, %v813
        %v822 = vsel %vm694, %v702, %v814
        %v823 = vsel %vm695, %v703, %v815
        %v824 = vsel %vm696, %v704, %v816
        %v825 = vsel %vm697, %v705, %v817
        %v826 = vsel %vm698, %v706, %v818
        %v827 = vsel %vm699, %v707, %v819
        %v828 = vsel %vm700, %v708, %v820
        %v829 = vsel %vm701, %v709, %v821
        %v830 = vpack.c.bf16 %v823, %v822
        %v831 = vpack.c.bf16 %v825, %v824
        %v832 = vpack.c.bf16 %v827, %v826
        %v833 = vpack.c.bf16 %v829, %v828
        %v834 = vld [vmem:[%s5] sm:$0xf]
        %v835 = vld [vmem:[%s5 + $0x4] sm:$0xf]
        %v836 = vld [vmem:[%s5 + $0x8] sm:$0xf]
        %v837 = vld [vmem:[%s5 + $0xc] sm:$0xf]
        %v838 = vld [vmem:[%s5 + $0x10] sm:$0xf]
        %v839 = vld [vmem:[%s5 + $0x14] sm:$0xf]
        %v840 = vld [vmem:[%s5 + $0x18] sm:$0xf]
        %v841 = vld [vmem:[%s5 + $0x1c] sm:$0xf]
        %v842 = vld [vmem:[%s5 + $0x20] sm:$0xf]
        %v843 = vld [vmem:[%s5 + $0x24] sm:$0xf]
        %v844 = vld [vmem:[%s5 + $0x28] sm:$0xf]
        %v845 = vld [vmem:[%s5 + $0x2c] sm:$0xf]
        %v846 = vld [vmem:[%s5 + $0x30] sm:$0xf]
        %v847 = vld [vmem:[%s5 + $0x34] sm:$0xf]
        %v848 = vld [vmem:[%s5 + $0x38] sm:$0xf]
        %v849 = vld [vmem:[%s5 + $0x3c] sm:$0xf]
        %v866 = vunpack.c.l.b16 %v834
        %v867 = vunpack.c.l.b16 %v835
        %v868 = vunpack.c.l.b16 %v836
        %v869 = vunpack.c.l.b16 %v837
        %v870 = vunpack.c.l.b16 %v838
        %v871 = vunpack.c.l.b16 %v839
        %v872 = vunpack.c.l.b16 %v840
        %v873 = vunpack.c.l.b16 %v841
        %v874 = vunpack.c.l.b16 %v842
        %v875 = vunpack.c.l.b16 %v843
        %v876 = vunpack.c.l.b16 %v844
        %v877 = vunpack.c.l.b16 %v845
        %v878 = vunpack.c.l.b16 %v846
        %v879 = vunpack.c.l.b16 %v847
        %v880 = vunpack.c.l.b16 %v848
        %v881 = vunpack.c.l.b16 %v849
        %v882 = vpack.c.b16 %v867, %v866
        %v883 = vpack.c.b16 %v869, %v868
        %v884 = vpack.c.b16 %v871, %v870
        %v885 = vpack.c.b16 %v873, %v872
        %v886 = vpack.c.b16 %v875, %v874
        %v887 = vpack.c.b16 %v877, %v876
        %v888 = vpack.c.b16 %v879, %v878
        %v889 = vpack.c.b16 %v881, %v880
        %898 = vmatprep.subr.bf16.mxu0 0
        %899 = vmatpush1.bf16.msra.mxu0 %v882
        %900 = vmatprep.subr.bf16.mxu0 0
        %901 = vmatpush1.bf16.msra.mxu0 %v883
        %902 = vmatprep.subr.bf16.mxu0 0
        %903 = vmatpush1.bf16.msra.mxu0 %v884
        %904 = vmatprep.subr.bf16.mxu0 0
        %905 = vmatpush1.bf16.msra.mxu0 %v885
        %906 = vmatprep.subr.bf16.mxu0 0
        %907 = vmatpush1.bf16.msra.mxu0 %v886
        %908 = vmatprep.subr.bf16.mxu0 0
        %909 = vmatpush1.bf16.msra.mxu0 %v887
        %910 = vmatprep.subr.bf16.mxu0 0
        %911 = vmatpush1.bf16.msra.mxu0 %v888
        %912 = vmatprep.subr.bf16.mxu0 0
        %913 = vmatpush1.bf16.msra.mxu0 %v889
        %914 = vmatprep.subr.bf16.mxu0 0
        %915 = vmatpush1.bf16.msra.mxu0 0
        %916 = vmatprep.subr.bf16.mxu0 0
        %917 = vmatpush1.bf16.msra.mxu0 0
        %918 = vmatprep.subr.bf16.mxu0 0
        %919 = vmatpush1.bf16.msra.mxu0 0
        %920 = vmatprep.subr.bf16.mxu0 0
        %921 = vmatpush1.bf16.msra.mxu0 0
        %922 = vmatprep.subr.bf16.mxu0 0
        %923 = vmatpush1.bf16.msra.mxu0 0
        %924 = vmatprep.subr.bf16.mxu0 0
        %925 = vmatpush1.bf16.msra.mxu0 0
        %926 = vmatprep.subr.bf16.mxu0 0
        %927 = vmatpush1.bf16.msra.mxu0 0
        %928 = vmatprep.subr.bf16.mxu0 0
        %929 = vmatpush1.bf16.msra.mxu0 0
        %930 = vmatprep.mubr.bf16.mxu0 0
        %931 = vmatmul.mubr.bf16.gmra.mrb[0].mxu0 %v830
        %v932 = vpop.f32.mrb[0].mxu0
        %v933 = vadd.f32 0.0, %v932
        %v934 = vpop.f32.mrb[0].mxu0
        %v935 = vpop.f32.mrb[0].mxu0
        %v936 = vadd.f32 0.0, %v935
        %v937 = vpop.f32.mrb[0].mxu0
        %938 = vmatprep.mubr.bf16.mxu0 0
        %939 = vmatmul.mubr.bf16.gmra.mrb[0].mxu0 %v831
        %v940 = vpop.f32.mrb[0].mxu0
        %v941 = vadd.f32 0.0, %v940
        %v942 = vpop.f32.mrb[0].mxu0
        %v943 = vpop.f32.mrb[0].mxu0
        %v944 = vadd.f32 0.0, %v943
        %v945 = vpop.f32.mrb[0].mxu0
        %946 = vmatprep.mubr.bf16.mxu0 0
        %947 = vmatmul.mubr.bf16.gmra.mrb[0].mxu0 %v832
        %v948 = vpop.f32.mrb[0].mxu0
        %v949 = vadd.f32 0.0, %v948
        %v950 = vpop.f32.mrb[0].mxu0
        %v951 = vpop.f32.mrb[0].mxu0
        %v952 = vadd.f32 0.0, %v951
        %v953 = vpop.f32.mrb[0].mxu0
        %954 = vmatprep.mubr.bf16.mxu0 0
        %955 = vmatmul.mubr.bf16.gmra.mrb[0].mxu0 %v833
        %v956 = vpop.f32.mrb[0].mxu0
        %v957 = vadd.f32 0.0, %v956
        %v958 = vpop.f32.mrb[0].mxu0
        %v959 = vpop.f32.mrb[0].mxu0
        %v960 = vadd.f32 0.0, %v959
        %v961 = vpop.f32.mrb[0].mxu0
        %962 = vdwg.mxu0
        %v963 = vpack.c.bf16 %v936, %v933
        %v964 = vpack.c.bf16 %v944, %v941
        %v965 = vpack.c.bf16 %v952, %v949
        %v966 = vpack.c.bf16 %v960, %v957
        %v968 = vlaneseq
        %v969 = vshrl.u32 %v968, 7
        %v970 = vsub.s32 0, %v969
        %v971 = vrot.slane %v350, %v970
        %973 = vmatprep.subr.bf16.mxu0 0
        %974 = vmatpush1.bf16.msra.mxu0 %v963
        %975 = vmatprep.subr.bf16.mxu0 0
        %976 = vmatpush1.bf16.msra.mxu0 %v964
        %977 = vmatprep.subr.bf16.mxu0 0
        %978 = vmatpush1.bf16.msra.mxu0 %v965
        %979 = vmatprep.subr.bf16.mxu0 0
        %980 = vmatpush1.bf16.msra.mxu0 %v966
        %981 = vmatprep.subr.bf16.mxu0 0
        %982 = vmatpush1.bf16.msra.mxu0 0
        %983 = vmatprep.subr.bf16.mxu0 0
        %984 = vmatpush1.bf16.msra.mxu0 0
        %985 = vmatprep.subr.bf16.mxu0 0
        %986 = vmatpush1.bf16.msra.mxu0 0
        %987 = vmatprep.subr.bf16.mxu0 0
        %988 = vmatpush1.bf16.msra.mxu0 0
        %989 = vmatprep.subr.bf16.mxu0 0
        %990 = vmatpush1.bf16.msra.mxu0 0
        %991 = vmatprep.subr.bf16.mxu0 0
        %992 = vmatpush1.bf16.msra.mxu0 0
        %993 = vmatprep.subr.bf16.mxu0 0
        %994 = vmatpush1.bf16.msra.mxu0 0
        %995 = vmatprep.subr.bf16.mxu0 0
        %996 = vmatpush1.bf16.msra.mxu0 0
        %997 = vmatprep.subr.bf16.mxu0 0
        %998 = vmatpush1.bf16.msra.mxu0 0
        %999 = vmatprep.subr.bf16.mxu0 0
        %1000 = vmatpush1.bf16.msra.mxu0 0
        %1001 = vmatprep.subr.bf16.mxu0 0
        %1002 = vmatpush1.bf16.msra.mxu0 0
        %1003 = vmatprep.subr.bf16.mxu0 0
        %1004 = vmatpush1.bf16.msra.mxu0 0
        %1005 = vmatprep.mubr.bf16.mxu0 0
        %1006 = vmatmul.mubr.bf16.gmra.mrb[0].mxu0 %v610
        %v1007 = vpop.f32.mrb[0].mxu0
        %v1008 = vadd.f32 %v971, %v1007
        %v1009 = vpop.f32.mrb[0].mxu0
        %v1010 = vpop.f32.mrb[0].mxu0
        %v1011 = vadd.f32 %v971, %v1010
        %v1012 = vpop.f32.mrb[0].mxu0
        %1013 = vmatprep.mubr.bf16.mxu0 0
        %1014 = vmatmul.mubr.bf16.gmra.mrb[0].mxu0 %v613
        %v1015 = vpop.f32.mrb[0].mxu0
        %v1016 = vadd.f32 %v971, %v1015
        %v1017 = vpop.f32.mrb[0].mxu0
        %v1018 = vpop.f32.mrb[0].mxu0
        %v1019 = vadd.f32 %v971, %v1018
        %v1020 = vpop.f32.mrb[0].mxu0
        %1021 = vmatprep.mubr.bf16.mxu0 0
        %1022 = vmatmul.mubr.bf16.gmra.mrb[0].mxu0 %v616
        %v1023 = vpop.f32.mrb[0].mxu0
        %v1024 = vadd.f32 %v971, %v1023
        %v1025 = vpop.f32.mrb[0].mxu0
        %v1026 = vpop.f32.mrb[0].mxu0
        %v1027 = vadd.f32 %v971, %v1026
        %v1028 = vpop.f32.mrb[0].mxu0
        %1029 = vmatprep.mubr.bf16.mxu0 0
        %1030 = vmatmul.mubr.bf16.gmra.mrb[0].mxu0 %v619
        %v1031 = vpop.f32.mrb[0].mxu0
        %v1032 = vadd.f32 %v971, %v1031
        %v1033 = vpop.f32.mrb[0].mxu0
        %v1034 = vpop.f32.mrb[0].mxu0
        %v1035 = vadd.f32 %v971, %v1034
        %v1036 = vpop.f32.mrb[0].mxu0
        %1037 = vdwg.mxu0
        %1038 = vst [vmem:[%s313] sm:$0xff] %v1008
        %1039 = vst [vmem:[%s313 + $0x8] sm:$0xff] %v1011
        %1040 = vst [vmem:[%s313 + $0x10] sm:$0xff] %v1016
        %1041 = vst [vmem:[%s313 + $0x18] sm:$0xff] %v1019
        %1042 = vst [vmem:[%s313 + $0x20] sm:$0xff] %v1024
        %1043 = vst [vmem:[%s313 + $0x28] sm:$0xff] %v1027
        %1044 = vst [vmem:[%s313 + $0x30] sm:$0xff] %v1032
        %1045 = vst [vmem:[%s313 + $0x38] sm:$0xff] %v1035
        %s1046 = sand.u32 %s208, 1
        %s1047 = scalar_lea.sflag [#allocation3], %s1046
        %s1048 = sand.u32 %s208, 1
        %s1049 = smul.addr %s1048, 64
        %s1050 = scalar_lea.vmem [#allocation2], %s1049
        // Predicated region
        $region53: #{tpu_custom_call.1} parent=51 // pred_check
          %p1051 = pneg %p218
        $region54: #{tpu_custom_call.1} parent=51 // pred_check_branch
          %1053 = sbr.rel (%p1051) target = $region56
        $region55: #{tpu_custom_call.1} parent=51 // pred_region
          %s1055 = ssub.s32 1024, 1024
          %1056 = vsyncadd %s1047, %s1055
          %s1057 = smul.addr %s22, 8
          %s1058 = smul.addr %s1057, 128
          %s1059 = scalar_lea.hbm %s8, %s1058
          %s1060 = sshll.u32 %s1050, 4
          %s1061 = int_to_ptr.vmem [resolvable:$true] %s1060
          %1066 = dma.vmem_to_hbm [thread:$0]  %s1061, 1024, %s1059, %s1047, 128, 128, 8
        $region56: #{tpu_custom_call.1} parent=51 // pred_fallthru
          _
      $region52: #{tpu_custom_call.1} parent=5 // pred_fallthru
        _
      %p1067 = scmp.le.s32.totalorder 2, %s17
      // Predicated region
      $region57: #{tpu_custom_call.1} parent=5 // pred_check
        %p1068 = pneg %p1067
      $region58: #{tpu_custom_call.1} parent=5 // pred_check_branch
        %1070 = sbr.rel (%p1068) target = $region60
      $region59: #{tpu_custom_call.1} parent=5 // pred_region
        %s1071 = ssub.s32 %s17, 2
        // Predicated region
        $region61: #{tpu_custom_call.1} parent=59 // pred_check
          %p1072 = pneg %p224
        $region62: #{tpu_custom_call.1} parent=59 // pred_check_branch
          %1074 = sbr.rel (%p1072) target = $region64
        $region63: #{tpu_custom_call.1} parent=59 // pred_region
          %s1075 = sand.u32 %s209, 1
          %s1076 = scalar_lea.sflag [#allocation3], %s1075
          %s1077 = sand.u32 %s209, 1
          %s1078 = smul.addr %s1077, 64
          %s1079 = scalar_lea.vmem [#allocation2], %s1078
          %1080 = dma.done %s1076, 1024
        $region64: #{tpu_custom_call.1} parent=59 // pred_fallthru
          _
      $region60: #{tpu_custom_call.1} parent=5 // pred_fallthru
        _
    $region6: #{tpu_custom_call.1} parent=1 // loop_footer
      %s21 = sadd.s32 1, %s17
    $region7: #{tpu_custom_call.1} parent=1 // loop_footer_branch
      %16 = sbr.rel target = $region3
    $region8: #{tpu_custom_call.1} parent=1 // loop_exit
      _
    %1081 = vsyncpa [#allocation3], 1
    %s1082 = scalar_lea.sflag [#allocation3], 1
    %1083 = vsyncpa %s1082, 1

</llo_original>
